<compile_context>
chip_gen: v7x
topology: tpu7x:2x2x1
jax: 0.10.0
libtpu: 0.0.40
codegen_flags: <defaults>
</compile_context>

<pallas_src>
import jax
import jax.numpy as jnp
from jax import lax
from jax.experimental import pallas as pl
from jax.experimental.pallas import tpu as pltpu


def _round_up(x, m):
    return (x + m - 1) // m * m


def _pick_bn(N):
    """Batch tile: multiple of 8 (legal (8,128) output tiling) and, when the
    batch allows it, small enough that the batch grid axis has >= 2 steps so
    both v7x TensorCores stream (no-op on single-TC v5e/v6e)."""
    best = N  # fall back: whole batch in one grid step
    for bn in range(8, N // 2 + 1, 8):
        if N % bn == 0:
            best = bn
    return best
    # NOTE: for tiny N (< 16) the batch axis cannot be split; a channel-tile
    # parallel axis (with the MLP hoisted to JAX) would be needed to feed both
    # v7x TensorCores in that regime.


def _pick_cs(C, max_cs=32):
    """Channel-slice width for the fold: bounds the live accumulator slice to
    ~bn*cs/8 vregs so realistic channel counts (C=512..2048) never spill."""
    if C <= max_cs:
        return C
    for cs in range(max_cs, 7, -1):
        if C % cs == 0 and cs % 8 == 0:
            return cs
    for cs in range(max_cs, 0, -1):
        if C % cs == 0:
            return cs
    return C


def _vmem_capacity_bytes():
    try:
        return int(pltpu.get_tpu_info().vmem_capacity_bytes)
    except Exception:
        return 64 << 20  # conservative: v7x has 64 MiB/TC (v5e/v6e: 128 MiB)


def _make_mise_kernel(S, bs, bn, C, cs, fold_dtype):
    n_full = bs // 128               # whole 128-lane chunks per spatial tile
    rem = bs - n_full * 128          # nonzero only when bs == S < 128 (1 tile)
    has_pad = (S % bs) != 0          # last spatial tile overruns S -> +inf mask

    def kernel(x_ref, w1_ref, b1_ref, w2_ref, b2_ref, out_ref, acc_ref):
        si = pl.program_id(1)
        pinf = jnp.array(jnp.inf, dtype=fold_dtype)

        # Init running-min accumulator on the first spatial tile of each batch tile.
        @pl.when(si == 0)
        def _init():
            acc_ref[...] = jnp.full(acc_ref.shape, jnp.inf, dtype=acc_ref.dtype)

        def fold(masked):
            # Outer static loop over channel slices keeps the live accumulator
            # small (<= bn*cs/8 vregs); inner loop streams 128-lane chunks
            # straight from the x block (no full-tile f32 temporary).
            for c0 in range(0, C, cs):
                csz = min(cs, C - c0)
                acc = acc_ref[:, c0:c0 + csz, :]

                def chunk_step(off, a, _c0=c0, _csz=csz):
                    chunk = x_ref[:, _c0:_c0 + _csz, pl.ds(off, 128)]
                    chunk = chunk.astype(fold_dtype)
                    if masked:
                        pos = (si * bs + off
                               + lax.broadcasted_iota(jnp.int32, (1, 1, 128), 2))
                        chunk = jnp.where(pos < S, chunk, pinf)
                    return jnp.minimum(a, chunk)

                if n_full > 0:
                    if n_full <= 8:
                        # Short loop: full static unroll (bounded live range).
                        for j in range(n_full):
                            acc = chunk_step(j * 128, acc)
                    else:
                        # Long loop: rolled with partial unroll so code size and
                        # vreg lifetimes stay bounded at large spatial tiles.
                        acc = lax.fori_loop(
                            0, n_full,
                            lambda j, a: chunk_step(pl.multiple_of(j * 128, 128), a),
                            acc, unroll=8)

                if rem > 0:
                    # S < 128: single full-extent tile; reduce the short tail to
                    # one lane and broadcast-min into the 128-wide accumulator.
                    tail = x_ref[:, c0:c0 + csz, n_full * 128:bs].astype(fold_dtype)
                    acc = jnp.minimum(acc, jnp.min(tail, axis=-1, keepdims=True))

                acc_ref[:, c0:c0 + csz, :] = acc

        if has_pad:
            # Tail mask only where it is needed: the last spatial tile.
            @pl.when(si < pl.num_programs(1) - 1)
            def _full_tiles():
                fold(masked=False)

            @pl.when(si == pl.num_programs(1) - 1)
            def _tail_tile():
                fold(masked=True)
        else:
            fold(masked=False)

        # Excitation MLP once, on the last spatial tile (tiny vs. the streaming min).
        @pl.when(si == pl.num_programs(1) - 1)
        def _finalize():
            s = jnp.min(acc_ref[...], axis=-1).astype(jnp.float32)       # (bn, C)
            h = jnp.dot(s, w1_ref[...], preferred_element_type=jnp.float32) + b1_ref[...]
            h = jnp.maximum(h, 0.0)
            o = jnp.dot(h, w2_ref[...], preferred_element_type=jnp.float32) + b2_ref[...]
            out_ref[...] = jax.nn.sigmoid(o).astype(out_ref.dtype)

    return kernel


def mise_block(x_nchw, w1, b1, w2, b2, *, target_block_bytes=None):
    """MISEblock.forward: gate = sigmoid(W2 relu(W1 (-maxpool2d(-x)) + b1) + b2),
    returned as (N, C, 1, 1).  (The module returns the gate; it does not apply it.)"""
    N, C, H, W = x_nchw.shape
    hidden = w1.shape[0]                 # torch nn.Linear weight is (out, in)
    S = H * W
    itemsize = jnp.dtype(x_nchw.dtype).itemsize

    x_flat = x_nchw.reshape(N, C, S)
    w1_t = w1.T.astype(jnp.float32)      # (C, hidden)
    w2_t = w2.T.astype(jnp.float32)      # (hidden, C)
    b1_r = b1.reshape(1, hidden).astype(jnp.float32)
    b2_r = b2.reshape(1, C).astype(jnp.float32)

    # min() is exact in bf16, so fold/accumulate natively in bf16 on bf16 inputs
    # (halves HBM + VPU work per byte on v6e/v7x); everything else folds in f32.
    fold_dtype = jnp.bfloat16 if x_nchw.dtype == jnp.bfloat16 else jnp.float32

    bn = _pick_bn(N)
    nb = N // bn
    cs = _pick_cs(C)

    acc_bytes = bn * C * 128 * jnp.dtype(fold_dtype).itemsize
    weight_bytes = (C * hidden * 2 + C + hidden) * 4

    # Generation-aware VMEM budget (v7x: 64 MiB/TC, v5e/v6e: 128 MiB).
    vmem_cap = _vmem_capacity_bytes()
    vmem_ceiling = max(32 << 20, (vmem_cap * 3) // 4)
    if target_block_bytes is None:
        # ~6-8 MiB x-blocks on 64 MiB parts, 12-16 MiB on 128 MiB parts; always
        # leave room for the double-buffered x block, resident weights and acc.
        max_block = (16 << 20) if vmem_cap >= (96 << 20) else (8 << 20)
        avail = max(vmem_ceiling - 2 * weight_bytes - acc_bytes - (6 << 20), 2 << 20)
        target_block_bytes = int(min(max_block, max(1 << 20, avail // 2)))

    # Spatial tile: multiple of 128 lanes, never larger than S (except S < 128,
    # where the full-extent block is used), balanced across the tile count.
    bs_budget = max(128, (target_block_bytes // max(bn * C * itemsize, 1)) // 128 * 128)
    if S < 128:
        bs = S
    else:
        bs_cap = int(min(bs_budget, (S // 128) * 128))
        ns0 = int(pl.cdiv(S, bs_cap))
        bs = int(min(bs_cap, _round_up(int(pl.cdiv(S, ns0)), 128)))
    ns = int(pl.cdiv(S, bs))

    x_block_bytes = bn * C * bs * itemsize
    vmem_limit = int(min(
        max(2 * x_block_bytes + 2 * weight_bytes + acc_bytes + (6 << 20), 16 << 20),
        vmem_ceiling))

    cost = pl.CostEstimate(
        flops=N * C * S + 4 * N * C * hidden,          # min-compares + two tiny matmuls
        transcendentals=N * C,                         # sigmoid
        bytes_accessed=N * C * S * itemsize + weight_bytes + N * C * itemsize,
    )

    kernel = _make_mise_kernel(S, bs, bn, C, cs, fold_dtype)

    grid_spec = pltpu.PrefetchScalarGridSpec(
        num_scalar_prefetch=0,
        grid=(nb, ns),                   # batch parallel, spatial reduction innermost
        in_specs=[
            pl.BlockSpec((bn, C, bs), lambda b, s: (b, 0, s)),
            # Constant index_map -> DMA'd once, stay VMEM-resident across the grid.
            # (For r=1 with very large C on v7x, hoist this MLP into plain JAX
            #  instead to spend the VMEM on larger x blocks.)
            pl.BlockSpec((C, hidden), lambda b, s: (0, 0)),
            pl.BlockSpec((1, hidden), lambda b, s: (0, 0)),
            pl.BlockSpec((hidden, C), lambda b, s: (0, 0)),
            pl.BlockSpec((1, C), lambda b, s: (0, 0)),
        ],
        out_specs=pl.BlockSpec((bn, C), lambda b, s: (b, 0)),
        scratch_shapes=[pltpu.VMEM((bn, C, 128), fold_dtype)],
    )

    out = pl.pallas_call(
        kernel,
        out_shape=jax.ShapeDtypeStruct((N, C), x_nchw.dtype),
        grid_spec=grid_spec,
        compiler_params=pltpu.CompilerParams(
            dimension_semantics=("parallel", "arbitrary"),   # megacore over batch
            vmem_limit_bytes=vmem_limit,
        ),
        cost_estimate=cost,
    )(x_flat, w1_t, b1_r, w2_t, b2_r)

    return out.reshape(N, C, 1, 1)


def _reference(x_nchw, w1, b1, w2, b2):
    # Pure-JAX reference of the PyTorch forward (gate only, like the module).
    s = jnp.min(x_nchw.astype(jnp.float32), axis=(2, 3))     # -maxpool2d(-x)
    h = jnp.maximum(s @ w1.T + b1, 0.0)
    o = jax.nn.sigmoid(h @ w2.T + b2)
    return o.reshape(x_nchw.shape[0], x_nchw.shape[1], 1, 1)


if __name__ == "__main__":
    N, C, H, W = 2, 4, 16, 16
    r = 1
    hidden = C // r

    key = jax.random.PRNGKey(0)
    kx, k1, k2, k3, k4 = jax.random.split(key, 5)

    x = jax.random.normal(kx, (N, C, H, W), dtype=jnp.float32)

    # Deterministic init mimicking torch.nn.Linear (uniform in +/- 1/sqrt(fan_in)).
    bound1 = 1.0 / jnp.sqrt(jnp.float32(C))
    w1 = jax.random.uniform(k1, (hidden, C), jnp.float32, -bound1, bound1)
    b1 = jax.random.uniform(k2, (hidden,), jnp.float32, -bound1, bound1)
    bound2 = 1.0 / jnp.sqrt(jnp.float32(hidden))
    w2 = jax.random.uniform(k3, (C, hidden), jnp.float32, -bound2, bound2)
    b2 = jax.random.uniform(k4, (C,), jnp.float32, -bound2, bound2)

    y_ref = _reference(x, w1, b1, w2, b2)

    # 1) Default tiling (single 256-lane spatial tile at this toy size).
    y = jax.block_until_ready(mise_block(x, w1, b1, w2, b2))
    assert y.shape == (N, C, 1, 1)
    assert jnp.allclose(y, y_ref, atol=1e-5, rtol=1e-5), "mismatch vs reference"

    # 2) Force the multi-tile path (bs=128 -> 2 spatial tiles, resident accumulator).
    y_t = jax.block_until_ready(mise_block(x, w1, b1, w2, b2, target_block_bytes=1))
    assert jnp.allclose(y_t, y_ref, atol=1e-5, rtol=1e-5), "mismatch (tiled path)"

    # 3) Ragged spatial size: +inf tail mask applied only on the last tile.
    x_r = x[:, :, :13, :13]
    y_r = jax.block_until_ready(mise_block(x_r, w1, b1, w2, b2, target_block_bytes=1))
    assert jnp.allclose(y_r, _reference(x_r, w1, b1, w2, b2), atol=1e-5, rtol=1e-5), \
        "mismatch (ragged path)"

    # 4) Tiny spatial extent (S < 128, e.g. 7x7 late-stage SE input).
    x_s = x[:, :, :7, :7]
    y_s = jax.block_until_ready(mise_block(x_s, w1, b1, w2, b2))
    assert jnp.allclose(y_s, _reference(x_s, w1, b1, w2, b2), atol=1e-5, rtol=1e-5), \
        "mismatch (small-S path)"

    # 5) bf16 input: fold + accumulator stay in bf16 (min is exact), MLP in f32.
    x_b = x.astype(jnp.bfloat16)
    y_b = jax.block_until_ready(mise_block(x_b, w1, b1, w2, b2))
    y_b_ref = _reference(x_b.astype(jnp.float32), w1, b1, w2, b2)
    assert jnp.allclose(y_b.astype(jnp.float32), y_b_ref, atol=2e-2, rtol=2e-2), \
        "mismatch (bf16 path)"

    print("KERNEL_OK")
</pallas_src>

<mosaic_0001>
module attributes {stable_mosaic.version = 11 : i64} {
  func.func @kernel(%arg0: i32, %arg1: i32, %arg2: memref<2x4x256xf32, #tpu.memory_space<vmem>>, %arg3: memref<4x4xf32, #tpu.memory_space<vmem>>, %arg4: memref<1x4xf32, #tpu.memory_space<vmem>>, %arg5: memref<4x4xf32, #tpu.memory_space<vmem>>, %arg6: memref<1x4xf32, #tpu.memory_space<vmem>>, %arg7: memref<2x4xf32, #tpu.memory_space<vmem>>, %arg8: memref<2x4x128xf32, #tpu.memory_space<vmem>>) attributes {dimension_semantics = [#tpu.dimension_semantics<parallel>, #tpu.dimension_semantics<arbitrary>], iteration_bounds = array<i64: 1, 1>, scalar_prefetch = 0 : i64, scratch_operands = 1 : i64, tpu.core_type = #tpu.core_type<tc>, window_params = [{transform_indices = @transform_0, window_bounds = array<i64: 2, 4, 256>}, {pipeline_mode = #tpu.pipeline_mode<synchronous>, transform_indices = @transform_1, window_bounds = array<i64: 4, 4>}, {pipeline_mode = #tpu.pipeline_mode<synchronous>, transform_indices = @transform_2, window_bounds = array<i64: 1, 4>}, {pipeline_mode = #tpu.pipeline_mode<synchronous>, transform_indices = @transform_3, window_bounds = array<i64: 4, 4>}, {pipeline_mode = #tpu.pipeline_mode<synchronous>, transform_indices = @transform_4, window_bounds = array<i64: 1, 4>}, {transform_indices = @transform_5, window_bounds = array<i64: 2, 4>}]} {
    %c0_i32 = arith.constant 0 : i32
    %0 = arith.cmpi eq, %arg1, %c0_i32 : i32
    %1 = arith.extui %0 : i1 to i32
    %c0_i32_0 = arith.constant 0 : i32
    %2 = arith.cmpi ne, %1, %c0_i32_0 : i32
    scf.if %2 {
      %cst = arith.constant 0x7F800000 : f32
      %12 = vector.broadcast %cst : f32 to vector<2x4x128xf32>
      %c0_13 = arith.constant 0 : index
      %c0_14 = arith.constant 0 : index
      %c0_15 = arith.constant 0 : index
      %13 = vector.load %arg8[%c0_13, %c0_14, %c0_15] : memref<2x4x128xf32, #tpu.memory_space<vmem>>, vector<2x4x128xf32>
      tpu.vector_store %arg8[%c0_13, %c0_14, %c0_15], %12 {strides = array<i32>} : memref<2x4x128xf32, #tpu.memory_space<vmem>>, vector<2x4x128xf32>,
    } else {
    }
    %c0 = arith.constant 0 : index
    %c0_1 = arith.constant 0 : index
    %c0_2 = arith.constant 0 : index
    %3 = vector.load %arg8[%c0, %c0_1, %c0_2] : memref<2x4x128xf32, #tpu.memory_space<vmem>>, vector<2x4x128xf32>
    %c0_3 = arith.constant 0 : index
    %c0_4 = arith.constant 0 : index
    %c0_5 = arith.constant 0 : index
    %4 = vector.load %arg2[%c0_3, %c0_4, %c0_5] : memref<2x4x256xf32, #tpu.memory_space<vmem>>, vector<2x4x128xf32>
    %5 = arith.minimumf %3, %4 : vector<2x4x128xf32>
    %c0_6 = arith.constant 0 : index
    %c0_7 = arith.constant 0 : index
    %c128 = arith.constant 128 : index
    %6 = vector.load %arg2[%c0_6, %c0_7, %c128] : memref<2x4x256xf32, #tpu.memory_space<vmem>>, vector<2x4x128xf32>
    %7 = arith.minimumf %5, %6 : vector<2x4x128xf32>
    %c0_8 = arith.constant 0 : index
    %c0_9 = arith.constant 0 : index
    %c0_10 = arith.constant 0 : index
    %8 = vector.load %arg8[%c0_8, %c0_9, %c0_10] : memref<2x4x128xf32, #tpu.memory_space<vmem>>, vector<2x4x128xf32>
    tpu.vector_store %arg8[%c0_8, %c0_9, %c0_10], %7 {strides = array<i32>} : memref<2x4x128xf32, #tpu.memory_space<vmem>>, vector<2x4x128xf32>,
    %c0_i32_11 = arith.constant 0 : i32
    %9 = arith.cmpi eq, %arg1, %c0_i32_11 : i32
    %10 = arith.extui %9 : i1 to i32
    %c0_i32_12 = arith.constant 0 : i32
    %11 = arith.cmpi ne, %10, %c0_i32_12 : i32
    scf.if %11 {
      %c0_13 = arith.constant 0 : index
      %c0_14 = arith.constant 0 : index
      %c0_15 = arith.constant 0 : index
      %12 = vector.load %arg8[%c0_13, %c0_14, %c0_15] : memref<2x4x128xf32, #tpu.memory_space<vmem>>, vector<2x4x128xf32>
      %cst = arith.constant dense<0x7F800000> : vector<2x4xf32>
      %13 = vector.multi_reduction <minimumf>, %12, %cst [2] : vector<2x4x128xf32> to vector<2x4xf32>
      %c0_16 = arith.constant 0 : index
      %c0_17 = arith.constant 0 : index
      %14 = vector.load %arg3[%c0_16, %c0_17] : memref<4x4xf32, #tpu.memory_space<vmem>>, vector<4x4xf32>
      %cst_18 = arith.constant dense<0.000000e+00> : vector<2x4xf32>
      %15 = tpu.matmul %13, %14, %cst_18 {dimension_numbers = #tpu.dot_dimension_numbers<[1], [0], [0], [1], [0, 0, 1, 1], [], []>} : vector<2x4xf32>, vector<4x4xf32>, vector<2x4xf32> -> vector<2x4xf32>
      %c0_19 = arith.constant 0 : index
      %c0_20 = arith.constant 0 : index
      %16 = vector.load %arg4[%c0_19, %c0_20] : memref<1x4xf32, #tpu.memory_space<vmem>>, vector<1x4xf32>
      %17 = vector.broadcast %16 : vector<1x4xf32> to vector<2x4xf32>
      %18 = arith.addf %15, %17 : vector<2x4xf32>
      %cst_21 = arith.constant 0.000000e+00 : f32
      %19 = vector.broadcast %cst_21 : f32 to vector<2x4xf32>
      %20 = arith.maximumf %18, %19 : vector<2x4xf32>
      %c0_22 = arith.constant 0 : index
      %c0_23 = arith.constant 0 : index
      %21 = vector.load %arg5[%c0_22, %c0_23] : memref<4x4xf32, #tpu.memory_space<vmem>>, vector<4x4xf32>
      %cst_24 = arith.constant dense<0.000000e+00> : vector<2x4xf32>
      %22 = tpu.matmul %20, %21, %cst_24 {dimension_numbers = #tpu.dot_dimension_numbers<[1], [0], [0], [1], [0, 0, 1, 1], [], []>} : vector<2x4xf32>, vector<4x4xf32>, vector<2x4xf32> -> vector<2x4xf32>
      %c0_25 = arith.constant 0 : index
      %c0_26 = arith.constant 0 : index
      %23 = vector.load %arg6[%c0_25, %c0_26] : memref<1x4xf32, #tpu.memory_space<vmem>>, vector<1x4xf32>
      %24 = vector.broadcast %23 : vector<1x4xf32> to vector<2x4xf32>
      %25 = arith.addf %22, %24 : vector<2x4xf32>
      %26 = arith.negf %25 : vector<2x4xf32>
      %27 = math.exp %26 : vector<2x4xf32>
      %cst_27 = arith.constant 1.000000e+00 : f32
      %28 = vector.broadcast %cst_27 : f32 to vector<2x4xf32>
      %29 = arith.addf %28, %27 : vector<2x4xf32>
      %30 = arith.divf %28, %29 : vector<2x4xf32>
      %c0_28 = arith.constant 0 : index
      %c0_29 = arith.constant 0 : index
      %31 = vector.load %arg7[%c0_28, %c0_29] : memref<2x4xf32, #tpu.memory_space<vmem>>, vector<2x4xf32>
      tpu.vector_store %arg7[%c0_28, %c0_29], %30 {strides = array<i32>} : memref<2x4xf32, #tpu.memory_space<vmem>>, vector<2x4xf32>,
    } else {
    }
    return
  }
  func.func @transform_0(%arg0: i32, %arg1: i32) -> (i32, i32, i32) {
    %c0_i32 = arith.constant 0 : i32
    %c0_i32_0 = arith.constant 0 : i32
    return %arg0, %c0_i32, %arg1 : i32, i32, i32
  }
  func.func @transform_1(%arg0: i32, %arg1: i32) -> (i32, i32) {
    %c0_i32 = arith.constant 0 : i32
    %c0_i32_0 = arith.constant 0 : i32
    %c0_i32_1 = arith.constant 0 : i32
    return %c0_i32, %c0_i32_0 : i32, i32
  }
  func.func @transform_2(%arg0: i32, %arg1: i32) -> (i32, i32) {
    %c0_i32 = arith.constant 0 : i32
    %c0_i32_0 = arith.constant 0 : i32
    %c0_i32_1 = arith.constant 0 : i32
    return %c0_i32, %c0_i32_0 : i32, i32
  }
  func.func @transform_3(%arg0: i32, %arg1: i32) -> (i32, i32) {
    %c0_i32 = arith.constant 0 : i32
    %c0_i32_0 = arith.constant 0 : i32
    %c0_i32_1 = arith.constant 0 : i32
    return %c0_i32, %c0_i32_0 : i32, i32
  }
  func.func @transform_4(%arg0: i32, %arg1: i32) -> (i32, i32) {
    %c0_i32 = arith.constant 0 : i32
    %c0_i32_0 = arith.constant 0 : i32
    %c0_i32_1 = arith.constant 0 : i32
    return %c0_i32, %c0_i32_0 : i32, i32
  }
  func.func @transform_5(%arg0: i32, %arg1: i32) -> (i32, i32) {
    %c0_i32 = arith.constant 0 : i32
    %c0_i32_0 = arith.constant 0 : i32
    return %arg0, %c0_i32 : i32, i32
  }
}

</mosaic_0001>

<llo_original>
// kernel: tpu_custom_call.1
$region0: #{tpu_custom_call.1}
  #allocation0 [shape = 'u32[]', space=smem, size = 0x4, offset = 0x4, fixed_abs, tag = 'smem constant byte address 0x4 - core index']
  #allocation1 [shape = 'u32[144,128]{1,0:T(1,128)}', space=vmem, size = 0x12000, scoped, tag = 'internal scratch']
  #allocation2 [shape = 'f32[2,4,128]{2,1,0:T(4,128)}', space=vmem, size = 0x1000, scoped, tag = 'scratch operand']
  %s0 = inlined_call_operand.hbm [shape: f32[2,4,256], index: 0, kind: input, shape index: {}]
  %s1 = inlined_call_operand.hbm [shape: f32[4,4], index: 1, kind: input, shape index: {}]
  %s2 = inlined_call_operand.vmem [shape: f32[1,4], index: 2, kind: input, shape index: {}]
  %s3 = inlined_call_operand.vmem [shape: f32[4,4], index: 3, kind: input, shape index: {}]
  %s4 = inlined_call_operand.vmem [shape: f32[1,4], index: 4, kind: input, shape index: {}]
  %s5 = inlined_call_operand.hbm [shape: f32[2,4], index: 5, kind: output, shape index: {}]
  %s6 = sld [smem:[#allocation0]]
  $region46: #{tpu_custom_call.1} parent=0
    _
  %s8 = ssub.s32 1, %s6
  %s9 = scalar_select 0, %s8, %s6
  $region1: #{tpu_custom_call.1} parent=0
    #allocation3 [shape = 'u8[8192]{0}', space=vmem, size = 0x2000, scoped, tag = 'input window, operand 0, single buffered']
    #allocation4 [shape = 's32[1]{0}', space=sflag, size = 0x4, scoped, tag = 'scoped memory for tpu_custom_call.1']
    #allocation5 [shape = 's32[1]{0}', space=sflag, size = 0x4, scoped, tag = 'scoped memory for tpu_custom_call.1']
    #allocation6 [shape = 'u8[2048]{0}', space=vmem, size = 0x800, scoped, tag = 'input window, operand 1, single buffered']
    #allocation7 [shape = 's32[1]{0}', space=sflag, size = 0x4, scoped, tag = 'scoped memory for tpu_custom_call.1']
    #allocation8 [shape = 'u8[1024]{0}', space=vmem, size = 0x400, scoped, tag = 'output window, operand 0, single buffered']
    %10 = vsyncpa [#allocation4], 0
    %11 = vsyncpa [#allocation7], 0
    %12 = vsyncpa [#allocation5], 0
    // Predicated region
    $region2: #{tpu_custom_call.1} parent=1 // pred_check
      _
    $region3: #{tpu_custom_call.1} parent=1 // pred_check_branch
      %14 = sbr.rel (0) target = $region5
    $region4: #{tpu_custom_call.1} parent=1 // pred_region
      %s16 = ssub.s32 256, 256
      %17 = vsyncadd [#allocation4], %s16
      %s18 = sshll.u32 [#allocation3], 4
      %s19 = int_to_ptr.vmem [resolvable:$true] %s18
      %24 = dma.hbm_to_vmem [thread:$0]  %s0, 256, %s19, [#allocation4], 128, 128, 8
    $region5: #{tpu_custom_call.1} parent=1 // pred_fallthru
      _
    // Predicated region
    $region6: #{tpu_custom_call.1} parent=1 // pred_check
      _
    $region7: #{tpu_custom_call.1} parent=1 // pred_check_branch
      %26 = sbr.rel (0) target = $region9
    $region8: #{tpu_custom_call.1} parent=1 // pred_region
      %s28 = ssub.s32 64, 64
      %29 = vsyncadd [#allocation7], %s28
      %s31 = sshll.u32 [#allocation6], 4
      %s32 = int_to_ptr.vmem [resolvable:$true] %s31
      %34 = dma.hbm_to_vmem [thread:$0]  %s1, 64, %s32, [#allocation7]
    $region9: #{tpu_custom_call.1} parent=1 // pred_fallthru
      _
    // Predicated region
    $region10: #{tpu_custom_call.1} parent=1 // pred_check
      _
    $region11: #{tpu_custom_call.1} parent=1 // pred_check_branch
      %36 = sbr.rel (0) target = $region13
    $region12: #{tpu_custom_call.1} parent=1 // pred_region
      _
    $region13: #{tpu_custom_call.1} parent=1 // pred_fallthru
      _
    // Predicated region
    $region14: #{tpu_custom_call.1} parent=1 // pred_check
      _
    $region15: #{tpu_custom_call.1} parent=1 // pred_check_branch
      %38 = sbr.rel (0) target = $region17
    $region16: #{tpu_custom_call.1} parent=1 // pred_region
      _
    $region17: #{tpu_custom_call.1} parent=1 // pred_fallthru
      _
    // Predicated region
    $region18: #{tpu_custom_call.1} parent=1 // pred_check
      _
    $region19: #{tpu_custom_call.1} parent=1 // pred_check_branch
      %40 = sbr.rel (0) target = $region21
    $region20: #{tpu_custom_call.1} parent=1 // pred_region
      _
    $region21: #{tpu_custom_call.1} parent=1 // pred_fallthru
      _
    // Predicated region
    $region22: #{tpu_custom_call.1} parent=1 // pred_check
      _
    $region23: #{tpu_custom_call.1} parent=1 // pred_check_branch
      %42 = sbr.rel (0) target = $region25
    $region24: #{tpu_custom_call.1} parent=1 // pred_region
      %43 = dma.done [#allocation4], 256
    $region25: #{tpu_custom_call.1} parent=1 // pred_fallthru
      _
    // Predicated region
    $region26: #{tpu_custom_call.1} parent=1 // pred_check
      _
    $region27: #{tpu_custom_call.1} parent=1 // pred_check_branch
      %45 = sbr.rel (0) target = $region29
    $region28: #{tpu_custom_call.1} parent=1 // pred_region
      %46 = dma.done [#allocation7], 64
    $region29: #{tpu_custom_call.1} parent=1 // pred_fallthru
      _
    %p47 = scmp.eq.s32.totalorder 0, 0
    // Predicated region
    $region30: #{tpu_custom_call.1} parent=1 // pred_check
      %p48 = pneg %p47
    $region31: #{tpu_custom_call.1} parent=1 // pred_check_branch
      %50 = sbr.rel (%p48) target = $region33
    $region32: #{tpu_custom_call.1} parent=1 // pred_region
      %51 = vst [vmem:[#allocation2] sm:$0xf] inf
      %52 = vst [vmem:[#allocation2 + $0x4] sm:$0xf] inf
    $region33: #{tpu_custom_call.1} parent=1 // pred_fallthru
      _
    %v53 = vld [vmem:[#allocation2] sm:$0xf]
    %v54 = vld [vmem:[#allocation2 + $0x4] sm:$0xf]
    %v55 = vld [vmem:[#allocation3] sm:$0xf]
    %v56 = vld [vmem:[#allocation3 + $0x8] sm:$0xf]
    %v57 = vmin.f32 %v53, %v55
    %v58 = vmin.f32 %v54, %v56
    %v59 = vld [vmem:[#allocation3 + $0x4] sm:$0xf]
    %v60 = vld [vmem:[#allocation3 + $0xc] sm:$0xf]
    %v61 = vmin.f32 %v57, %v59
    %v62 = vmin.f32 %v58, %v60
    %63 = vst [vmem:[#allocation2] sm:$0xf] %v61
    %64 = vst [vmem:[#allocation2 + $0x4] sm:$0xf] %v62
    // Predicated region
    $region34: #{tpu_custom_call.1} parent=1 // pred_check
      %p65 = pneg %p47
    $region35: #{tpu_custom_call.1} parent=1 // pred_check_branch
      %67 = sbr.rel (%p65) target = $region37
    $region36: #{tpu_custom_call.1} parent=1 // pred_region
      %v68 = vld [vmem:[#allocation2] sm:$0xf]
      %v69 = vld [vmem:[#allocation2 + $0x4] sm:$0xf]
      %vm70 = vcmask 1043456
      %v71 = vsel %vm70, %v68, inf
      %72 = vmin.xlane.f32.xlu0 %v71
      %v73 = vpop.xlane.xlu0 %72
      %v74 = vsel %vm70, %v69, inf
      %75 = vmin.xlane.f32.xlu0 %v74
      %v76 = vpop.xlane.xlu0 %75
      %v77 = vld [vmem:[#allocation6] sm:$0xf]
      %v78 = vld [vmem:[%s2] sm:$0x1]
      %v80 = vlaneseq
      %v81 = vshrl.u32 %v80, 7
      %v82 = vsub.s32 0, %v81
      %v83 = vrot.slane %v78, %v82
      %v87 = vlaneseq
      %v88 = vand.u32 %v87, 127
      %v89 = vlaneseq
      %v90 = vshrl.u32 %v89, 7
      %v91 = vsub.s32 %v88, %v90
      %v92 = vrot.slane %v73, %v91
      %v93 = vlaneseq
      %v94 = vshrl.u32 %v93, 7
      %v95 = vsub.s32 %v88, %v94
      %v96 = vrot.slane %v76, %v95
      %vm97 = vcmask 1041409
      %v98 = vsel %vm97, %v96, %v92
      %vm99 = vcmask 31744
      %v100 = vsel %vm99, %v98, 0
      %v103 = vsel %vm70, %v77, 0
      %105 = vmatprep.subr.mxu0 0.0
      %106 = vmatpush1.msra.mxu0 %v103
      %107 = vmatprep.subr.mxu0 0.0
      %108 = vmatpush1.msra.mxu0 0.0
      %109 = vmatprep.subr.mxu0 0.0
      %110 = vmatpush1.msra.mxu0 0.0
      %111 = vmatprep.subr.mxu0 0.0
      %112 = vmatpush1.msra.mxu0 0.0
      %113 = vmatprep.subr.mxu0 0.0
      %114 = vmatpush1.msra.mxu0 0.0
      %115 = vmatprep.subr.mxu0 0.0
      %116 = vmatpush1.msra.mxu0 0.0
      %117 = vmatprep.subr.mxu0 0.0
      %118 = vmatpush1.msra.mxu0 0.0
      %119 = vmatprep.subr.mxu0 0.0
      %120 = vmatpush1.msra.mxu0 0.0
      %121 = vmatprep.subr.mxu0 0.0
      %122 = vmatpush1.msra.mxu0 0.0
      %123 = vmatprep.subr.mxu0 0.0
      %124 = vmatpush1.msra.mxu0 0.0
      %125 = vmatprep.subr.mxu0 0.0
      %126 = vmatpush1.msra.mxu0 0.0
      %127 = vmatprep.subr.mxu0 0.0
      %128 = vmatpush1.msra.mxu0 0.0
      %129 = vmatprep.subr.mxu0 0.0
      %130 = vmatpush1.msra.mxu0 0.0
      %131 = vmatprep.subr.mxu0 0.0
      %132 = vmatpush1.msra.mxu0 0.0
      %133 = vmatprep.subr.mxu0 0.0
      %134 = vmatpush1.msra.mxu0 0.0
      %135 = vmatprep.subr.mxu0 0.0
      %136 = vmatpush1.msra.mxu0 0.0
      %137 = vmatprep.subr.mxu0 0.0
      %138 = vmatpush1.msra.mxu0 0.0
      %139 = vmatprep.subr.mxu0 0.0
      %140 = vmatpush1.msra.mxu0 0.0
      %141 = vmatprep.subr.mxu0 0.0
      %142 = vmatpush1.msra.mxu0 0.0
      %143 = vmatprep.subr.mxu0 0.0
      %144 = vmatpush1.msra.mxu0 0.0
      %145 = vmatprep.subr.mxu0 0.0
      %146 = vmatpush1.msra.mxu0 0.0
      %147 = vmatprep.subr.mxu0 0.0
      %148 = vmatpush1.msra.mxu0 0.0
      %149 = vmatprep.subr.mxu0 0.0
      %150 = vmatpush1.msra.mxu0 0.0
      %151 = vmatprep.subr.mxu0 0.0
      %152 = vmatpush1.msra.mxu0 0.0
      %153 = vmatprep.subr.mxu0 0.0
      %154 = vmatpush1.msra.mxu0 0.0
      %155 = vmatprep.subr.mxu0 0.0
      %156 = vmatpush1.msra.mxu0 0.0
      %157 = vmatprep.subr.mxu0 0.0
      %158 = vmatpush1.msra.mxu0 0.0
      %159 = vmatprep.subr.mxu0 0.0
      %160 = vmatpush1.msra.mxu0 0.0
      %161 = vmatprep.subr.mxu0 0.0
      %162 = vmatpush1.msra.mxu0 0.0
      %163 = vmatprep.subr.mxu0 0.0
      %164 = vmatpush1.msra.mxu0 0.0
      %165 = vmatprep.subr.mxu0 0.0
      %166 = vmatpush1.msra.mxu0 0.0
      %167 = vmatprep.subr.mxu0 0.0
      %168 = vmatpush1.msra.mxu0 0.0
      %169 = vmatprep.mubr.f32.mxu0 0.0
      %170 = vmatmul.mubr.f32.gmra.mrb[0].mxu0 %v100
      %v171 = vpop.f32.mrb[0].mxu0
      %v172 = vadd.f32 %v83, %v171
      %v173 = vpop.f32.mrb[0].mxu0
      %174 = vdwg.mxu0
      %v175 = vmax.f32 %v172, 0.0
      %v176 = vld [vmem:[%s3] sm:$0xf]
      %v177 = vld [vmem:[%s4] sm:$0x1]
      %v179 = vlaneseq
      %v180 = vshrl.u32 %v179, 7
      %v181 = vsub.s32 0, %v180
      %v182 = vrot.slane %v177, %v181
      %v185 = vsel %vm99, %v175, 0
      %v188 = vsel %vm70, %v176, 0
      %190 = vmatprep.subr.mxu0 0.0
      %191 = vmatpush1.msra.mxu0 %v188
      %192 = vmatprep.subr.mxu0 0.0
      %193 = vmatpush1.msra.mxu0 0.0
      %194 = vmatprep.subr.mxu0 0.0
      %195 = vmatpush1.msra.mxu0 0.0
      %196 = vmatprep.subr.mxu0 0.0
      %197 = vmatpush1.msra.mxu0 0.0
      %198 = vmatprep.subr.mxu0 0.0
      %199 = vmatpush1.msra.mxu0 0.0
      %200 = vmatprep.subr.mxu0 0.0
      %201 = vmatpush1.msra.mxu0 0.0
      %202 = vmatprep.subr.mxu0 0.0
      %203 = vmatpush1.msra.mxu0 0.0
      %204 = vmatprep.subr.mxu0 0.0
      %205 = vmatpush1.msra.mxu0 0.0
      %206 = vmatprep.subr.mxu0 0.0
      %207 = vmatpush1.msra.mxu0 0.0
      %208 = vmatprep.subr.mxu0 0.0
      %209 = vmatpush1.msra.mxu0 0.0
      %210 = vmatprep.subr.mxu0 0.0
      %211 = vmatpush1.msra.mxu0 0.0
      %212 = vmatprep.subr.mxu0 0.0
      %213 = vmatpush1.msra.mxu0 0.0
      %214 = vmatprep.subr.mxu0 0.0
      %215 = vmatpush1.msra.mxu0 0.0
      %216 = vmatprep.subr.mxu0 0.0
      %217 = vmatpush1.msra.mxu0 0.0
      %218 = vmatprep.subr.mxu0 0.0
      %219 = vmatpush1.msra.mxu0 0.0
      %220 = vmatprep.subr.mxu0 0.0
      %221 = vmatpush1.msra.mxu0 0.0
      %222 = vmatprep.subr.mxu0 0.0
      %223 = vmatpush1.msra.mxu0 0.0
      %224 = vmatprep.subr.mxu0 0.0
      %225 = vmatpush1.msra.mxu0 0.0
      %226 = vmatprep.subr.mxu0 0.0
      %227 = vmatpush1.msra.mxu0 0.0
      %228 = vmatprep.subr.mxu0 0.0
      %229 = vmatpush1.msra.mxu0 0.0
      %230 = vmatprep.subr.mxu0 0.0
      %231 = vmatpush1.msra.mxu0 0.0
      %232 = vmatprep.subr.mxu0 0.0
      %233 = vmatpush1.msra.mxu0 0.0
      %234 = vmatprep.subr.mxu0 0.0
      %235 = vmatpush1.msra.mxu0 0.0
      %236 = vmatprep.subr.mxu0 0.0
      %237 = vmatpush1.msra.mxu0 0.0
      %238 = vmatprep.subr.mxu0 0.0
      %239 = vmatpush1.msra.mxu0 0.0
      %240 = vmatprep.subr.mxu0 0.0
      %241 = vmatpush1.msra.mxu0 0.0
      %242 = vmatprep.subr.mxu0 0.0
      %243 = vmatpush1.msra.mxu0 0.0
      %244 = vmatprep.subr.mxu0 0.0
      %245 = vmatpush1.msra.mxu0 0.0
      %246 = vmatprep.subr.mxu0 0.0
      %247 = vmatpush1.msra.mxu0 0.0
      %248 = vmatprep.subr.mxu0 0.0
      %249 = vmatpush1.msra.mxu0 0.0
      %250 = vmatprep.subr.mxu0 0.0
      %251 = vmatpush1.msra.mxu0 0.0
      %252 = vmatprep.subr.mxu0 0.0
      %253 = vmatpush1.msra.mxu0 0.0
      %254 = vmatprep.mubr.f32.mxu0 0.0
      %255 = vmatmul.mubr.f32.gmra.mrb[0].mxu0 %v185
      %v256 = vpop.f32.mrb[0].mxu0
      %v257 = vadd.f32 %v182, %v256
      %v258 = vpop.f32.mrb[0].mxu0
      %259 = vdwg.mxu0
      %v260 = vxor.u32 %v257, 2147483648
      %v261 = vmul.f32 %v260, 1.442695
      %v262 = vpow.pop %v261
      %v263 = vadd.f32 %v262, 1.0
      %v264 = vrcp.pop %v263
      %v265 = vmul.f32 1.0, %v264
      %vm266 = vcmask 25600
      %267 = vst.msk [vmem:[#allocation8] sm:$0x3] %vm266, %v265
    $region37: #{tpu_custom_call.1} parent=1 // pred_fallthru
      _
    // Predicated region
    $region38: #{tpu_custom_call.1} parent=1 // pred_check
      _
    $region39: #{tpu_custom_call.1} parent=1 // pred_check_branch
      %269 = sbr.rel (0) target = $region41
    $region40: #{tpu_custom_call.1} parent=1 // pred_region
      %s271 = ssub.s32 32, 32
      %272 = vsyncadd [#allocation5], %s271
      %s274 = sshll.u32 [#allocation8], 4
      %s275 = int_to_ptr.vmem [resolvable:$true] %s274
      %277 = dma.vmem_to_hbm [thread:$0]  %s275, 32, %s5, [#allocation5]
    $region41: #{tpu_custom_call.1} parent=1 // pred_fallthru
      _
    // Predicated region
    $region42: #{tpu_custom_call.1} parent=1 // pred_check
      _
    $region43: #{tpu_custom_call.1} parent=1 // pred_check_branch
      %279 = sbr.rel (0) target = $region45
    $region44: #{tpu_custom_call.1} parent=1 // pred_region
      %280 = dma.done [#allocation5], 32
    $region45: #{tpu_custom_call.1} parent=1 // pred_fallthru
      _
    %281 = vsyncpa [#allocation4], 1
    %282 = vsyncpa [#allocation7], 1
    %283 = vsyncpa [#allocation5], 1

</llo_original>
